<compile_context>
chip_gen: v6e
topology: v6e:2x2x1
jax: 0.10.0
libtpu: 0.0.40
codegen_flags: <defaults>
</compile_context>

<pallas_src>
import functools

import jax
import jax.numpy as jnp
from jax.experimental import pallas as pl
from jax.experimental.pallas import tpu as pltpu


def _round_up(x: int, m: int) -> int:
    return (x + m - 1) // m * m


# ---------------------------------------------------------------------------
# Fused two-layer kernel: grid over M tiles, weights resident in VMEM,
# hidden activation h lives entirely in vregs/VMEM (no HBM round-trip).
# ---------------------------------------------------------------------------
def _perception_kernel(x_ref, w1_ref, b1_ref, w2_ref, b2_ref, o_ref):
    # Layer 1: (tm, K) @ (K, H) -> f32 accumulate, bias + sigmoid in f32.
    h = jnp.dot(x_ref[...], w1_ref[...], preferred_element_type=jnp.float32)
    h = jax.nn.sigmoid(h + b1_ref[...])
    # Layer 2 consumes h directly (cast to the MXU compute dtype).
    y = jnp.dot(h.astype(w2_ref.dtype), w2_ref[...],
                preferred_element_type=jnp.float32)
    y = jax.nn.sigmoid(y + b2_ref[...])
    o_ref[...] = y.astype(o_ref.dtype)


@functools.partial(jax.jit, static_argnames=("tm", "compute_dtype"))
def perception_fused(x, w1, b1, w2, b2, *, tm=512, compute_dtype=jnp.bfloat16):
    M, K = x.shape
    Kw, H = w1.shape
    Hw, N = w2.shape
    assert K == Kw and H == Hw, "feature-dimension mismatch"

    out_dtype = x.dtype
    xc = x.astype(compute_dtype)
    w1c = w1.astype(compute_dtype)
    w2c = w2.astype(compute_dtype)
    b1r = b1.astype(jnp.float32).reshape(1, H)
    b2r = b2.astype(jnp.float32).reshape(1, N)

    # M tile: multiple of 8 (sublane); when M allows, expose >=2 parallel
    # tiles so both v7x TensorCores get work.
    tm = max(8, min(tm, _round_up(M, 8)))
    if pl.cdiv(M, tm) < 2 and M > 8:
        tm = max(8, _round_up(pl.cdiv(M, 2), 8))
    grid_m = pl.cdiv(M, tm)

    itm = jnp.dtype(compute_dtype).itemsize
    ito = jnp.dtype(out_dtype).itemsize
    est_vmem = (
        2 * tm * K * itm            # x tile (double-buffered)
        + 2 * tm * N * ito          # out tile
        + (K * H + H * N) * itm     # resident weights
        + (H + N) * 4               # biases (f32)
        + tm * H * 4                # h intermediate
    )
    cp_kwargs = {}
    if est_vmem > 14 * 1024 * 1024:
        cp_kwargs["vmem_limit_bytes"] = min(int(est_vmem * 2), 48 * 1024 * 1024)

    cost = pl.CostEstimate(
        flops=2 * M * K * H + 2 * M * H * N,
        transcendentals=M * (H + N),                       # one exp per sigmoid
        bytes_accessed=(M * K + K * H + H * N) * itm + (H + N) * 4 + M * N * ito,
    )

    return pl.pallas_call(
        _perception_kernel,
        out_shape=jax.ShapeDtypeStruct((M, N), out_dtype),
        grid=(grid_m,),
        in_specs=[
            pl.BlockSpec((tm, K), lambda i: (i, 0)),   # x: full-K block (no pad)
            pl.BlockSpec((K, H), lambda i: (0, 0)),    # w1: resident
            pl.BlockSpec((1, H), lambda i: (0, 0)),    # b1: resident
            pl.BlockSpec((H, N), lambda i: (0, 0)),    # w2: resident
            pl.BlockSpec((1, N), lambda i: (0, 0)),    # b2: resident
        ],
        out_specs=pl.BlockSpec((tm, N), lambda i: (i, 0)),
        compiler_params=pltpu.CompilerParams(
            dimension_semantics=("parallel",), **cp_kwargs),
        cost_estimate=cost,
    )(xc, w1c, b1r, w2c, b2r)


# ---------------------------------------------------------------------------
# Tiled single-layer fallback (used only when the weights do not fit VMEM).
# ---------------------------------------------------------------------------
def _linear_sigmoid_kernel(x_ref, w_ref, b_ref, o_ref, acc_ref):
    k = pl.program_id(2)

    @pl.when(k == 0)
    def _():
        acc_ref[...] = jnp.broadcast_to(b_ref[...], acc_ref.shape)

    acc_ref[...] += jnp.dot(x_ref[...], w_ref[...],
                            preferred_element_type=jnp.float32)

    @pl.when(k == pl.num_programs(2) - 1)
    def _():
        o_ref[...] = jax.nn.sigmoid(acc_ref[...]).astype(o_ref.dtype)


@functools.partial(jax.jit,
                   static_argnames=("tm", "tn", "tk", "compute_dtype"))
def linear_sigmoid(x, w, b, *, tm=512, tn=512, tk=1024,
                   compute_dtype=jnp.bfloat16):
    M, K = x.shape
    Kw, N = w.shape
    assert K == Kw, "in_features mismatch"

    out_dtype = x.dtype
    xc = x.astype(compute_dtype)
    wc = w.astype(compute_dtype)
    br = b.astype(jnp.float32).reshape(1, N)

    tm = max(8, min(tm, _round_up(M, 8)))
    tn = N if N < 128 else min(tn, _round_up(N, 128))

    # Only pad/tile the contraction axis when K genuinely exceeds tk; a
    # full-K block is legal and avoids the padding FLOP/DMA blow-up.
    if K <= tk:
        tk = K
        Kp = K
    else:
        tk = _round_up(tk, 128)
        Kp = _round_up(K, tk)
        if Kp != K:
            # Zero padding keeps the reduction exact.
            xc = jnp.pad(xc, ((0, 0), (0, Kp - K)))
            wc = jnp.pad(wc, ((0, Kp - K), (0, 0)))

    grid = (pl.cdiv(M, tm), pl.cdiv(N, tn), Kp // tk)
    gm, gn, _ = grid

    itm = jnp.dtype(compute_dtype).itemsize
    ito = jnp.dtype(out_dtype).itemsize
    est_vmem = (2 * (tm * tk + tk * tn) * itm + 2 * tm * tn * ito
                + tm * tn * 4 + 2 * tn * 4)
    cp_kwargs = {}
    if est_vmem > 14 * 1024 * 1024:
        cp_kwargs["vmem_limit_bytes"] = min(int(est_vmem * 2), 48 * 1024 * 1024)

    cost = pl.CostEstimate(
        flops=2 * M * N * Kp,
        transcendentals=M * N,
        # Account for tile re-reads: x is read gn times, w is read gm times.
        bytes_accessed=(M * Kp * itm) * gn + (Kp * N * itm) * gm
        + N * 4 * gm + M * N * ito,
    )

    return pl.pallas_call(
        _linear_sigmoid_kernel,
        out_shape=jax.ShapeDtypeStruct((M, N), out_dtype),
        grid=grid,
        in_specs=[
            pl.BlockSpec((tm, tk), lambda i, j, k: (i, k)),
            pl.BlockSpec((tk, tn), lambda i, j, k: (k, j)),
            pl.BlockSpec((1, tn), lambda i, j, k: (0, j)),
        ],
        out_specs=pl.BlockSpec((tm, tn), lambda i, j, k: (i, j)),
        scratch_shapes=[pltpu.VMEM((tm, tn), jnp.float32)],
        compiler_params=pltpu.CompilerParams(
            dimension_semantics=("parallel", "parallel", "arbitrary"),
            **cp_kwargs),
        cost_estimate=cost,
    )(xc, wc, br)


# ---------------------------------------------------------------------------
# Public forward pass.
# ---------------------------------------------------------------------------
def perception(x, w1, b1, w2, b2, *, compute_dtype=jnp.bfloat16):
    """Forward pass of the PyTorch `Perception` module."""
    _, K = x.shape
    _, H = w1.shape
    _, N = w2.shape
    itm = jnp.dtype(compute_dtype).itemsize
    weight_bytes = (K * H + H * N) * itm + (H + N) * 4
    # Fused path whenever both weight matrices comfortably fit scoped VMEM
    # (conservative: works on v5e / v6e / v7x defaults).
    if weight_bytes <= 8 * 1024 * 1024:
        return perception_fused(x, w1, b1, w2, b2, compute_dtype=compute_dtype)
    h = linear_sigmoid(x, w1, b1, compute_dtype=compute_dtype)
    return linear_sigmoid(h, w2, b2, compute_dtype=compute_dtype)


if __name__ == "__main__":
    key = jax.random.PRNGKey(0)
    k_x, k_w1, k_b1, k_w2, k_b2 = jax.random.split(key, 5)

    batch = 8
    in_features = 32
    hid_features = 64
    out_features = 16

    # Deterministic "randn"-style parameters (matches nn.Parameter(torch.randn)).
    x = jax.random.normal(k_x, (batch, in_features), dtype=jnp.float32)
    w1 = jax.random.normal(k_w1, (in_features, hid_features), dtype=jnp.float32)
    b1 = jax.random.normal(k_b1, (hid_features,), dtype=jnp.float32)
    w2 = jax.random.normal(k_w2, (hid_features, out_features), dtype=jnp.float32)
    b2 = jax.random.normal(k_b2, (out_features,), dtype=jnp.float32)

    y_ref = jax.nn.sigmoid(jax.nn.sigmoid(x @ w1 + b1) @ w2 + b2)

    # Fused kernel, f32 MXU path: exact check.
    y_f32 = perception(x, w1, b1, w2, b2, compute_dtype=jnp.float32)
    jax.block_until_ready(y_f32)
    assert jnp.allclose(y_f32, y_ref, atol=1e-5, rtol=1e-5), "f32 mismatch"

    # Fused kernel, default bf16 MXU path: loose check (bf16 rounding).
    y_bf16 = perception(x, w1, b1, w2, b2)
    jax.block_until_ready(y_bf16)
    assert jnp.allclose(y_bf16, y_ref, atol=8e-2, rtol=8e-2), "bf16 mismatch"

    # Exercise the tiled fallback path once as well (f32, exact check).
    h = linear_sigmoid(x, w1, b1, compute_dtype=jnp.float32)
    y_layered = linear_sigmoid(h, w2, b2, compute_dtype=jnp.float32)
    jax.block_until_ready(y_layered)
    assert jnp.allclose(y_layered, y_ref, atol=1e-5, rtol=1e-5), "layered mismatch"

    print("KERNEL_OK")
</pallas_src>

<mosaic_0001>
module attributes {stable_mosaic.version = 11 : i64} {
  func.func @_perception_kernel(%arg0: i32, %arg1: memref<8x32xf32, #tpu.memory_space<vmem>>, %arg2: memref<32x64xf32, #tpu.memory_space<vmem>>, %arg3: memref<1x64xf32, #tpu.memory_space<vmem>>, %arg4: memref<64x16xf32, #tpu.memory_space<vmem>>, %arg5: memref<1x16xf32, #tpu.memory_space<vmem>>, %arg6: memref<8x16xf32, #tpu.memory_space<vmem>>) attributes {dimension_semantics = [#tpu.dimension_semantics<parallel>], iteration_bounds = array<i64: 1>, scalar_prefetch = 0 : i64, scratch_operands = 0 : i64, tpu.core_type = #tpu.core_type<tc>, window_params = [{transform_indices = @transform_0, window_bounds = array<i64: 8, 32>}, {pipeline_mode = #tpu.pipeline_mode<synchronous>, transform_indices = @transform_1, window_bounds = array<i64: 32, 64>}, {pipeline_mode = #tpu.pipeline_mode<synchronous>, transform_indices = @transform_2, window_bounds = array<i64: 1, 64>}, {pipeline_mode = #tpu.pipeline_mode<synchronous>, transform_indices = @transform_3, window_bounds = array<i64: 64, 16>}, {pipeline_mode = #tpu.pipeline_mode<synchronous>, transform_indices = @transform_4, window_bounds = array<i64: 1, 16>}, {transform_indices = @transform_5, window_bounds = array<i64: 8, 16>}]} {
    %c0 = arith.constant 0 : index
    %c0_0 = arith.constant 0 : index
    %0 = vector.load %arg1[%c0, %c0_0] : memref<8x32xf32, #tpu.memory_space<vmem>>, vector<8x32xf32>
    %c0_1 = arith.constant 0 : index
    %c0_2 = arith.constant 0 : index
    %1 = vector.load %arg2[%c0_1, %c0_2] : memref<32x64xf32, #tpu.memory_space<vmem>>, vector<32x64xf32>
    %cst = arith.constant dense<0.000000e+00> : vector<8x64xf32>
    %2 = tpu.matmul %0, %1, %cst {dimension_numbers = #tpu.dot_dimension_numbers<[1], [0], [0], [1], [0, 0, 1, 1], [], []>} : vector<8x32xf32>, vector<32x64xf32>, vector<8x64xf32> -> vector<8x64xf32>
    %c0_3 = arith.constant 0 : index
    %c0_4 = arith.constant 0 : index
    %3 = vector.load %arg3[%c0_3, %c0_4] : memref<1x64xf32, #tpu.memory_space<vmem>>, vector<1x64xf32>
    %4 = vector.broadcast %3 : vector<1x64xf32> to vector<8x64xf32>
    %5 = arith.addf %2, %4 : vector<8x64xf32>
    %6 = arith.negf %5 : vector<8x64xf32>
    %7 = math.exp %6 : vector<8x64xf32>
    %cst_5 = arith.constant 1.000000e+00 : f32
    %8 = vector.broadcast %cst_5 : f32 to vector<8x64xf32>
    %9 = arith.addf %8, %7 : vector<8x64xf32>
    %10 = arith.divf %8, %9 : vector<8x64xf32>
    %c0_6 = arith.constant 0 : index
    %c0_7 = arith.constant 0 : index
    %11 = vector.load %arg4[%c0_6, %c0_7] : memref<64x16xf32, #tpu.memory_space<vmem>>, vector<64x16xf32>
    %cst_8 = arith.constant dense<0.000000e+00> : vector<8x16xf32>
    %12 = tpu.matmul %10, %11, %cst_8 {dimension_numbers = #tpu.dot_dimension_numbers<[1], [0], [0], [1], [0, 0, 1, 1], [], []>} : vector<8x64xf32>, vector<64x16xf32>, vector<8x16xf32> -> vector<8x16xf32>
    %c0_9 = arith.constant 0 : index
    %c0_10 = arith.constant 0 : index
    %13 = vector.load %arg5[%c0_9, %c0_10] : memref<1x16xf32, #tpu.memory_space<vmem>>, vector<1x16xf32>
    %14 = vector.broadcast %13 : vector<1x16xf32> to vector<8x16xf32>
    %15 = arith.addf %12, %14 : vector<8x16xf32>
    %16 = arith.negf %15 : vector<8x16xf32>
    %17 = math.exp %16 : vector<8x16xf32>
    %cst_11 = arith.constant 1.000000e+00 : f32
    %18 = vector.broadcast %cst_11 : f32 to vector<8x16xf32>
    %19 = arith.addf %18, %17 : vector<8x16xf32>
    %20 = arith.divf %18, %19 : vector<8x16xf32>
    %c0_12 = arith.constant 0 : index
    %c0_13 = arith.constant 0 : index
    %21 = vector.load %arg6[%c0_12, %c0_13] : memref<8x16xf32, #tpu.memory_space<vmem>>, vector<8x16xf32>
    tpu.vector_store %arg6[%c0_12, %c0_13], %20 {strides = array<i32>} : memref<8x16xf32, #tpu.memory_space<vmem>>, vector<8x16xf32>,
    return
  }
  func.func @transform_0(%arg0: i32) -> (i32, i32) {
    %c0_i32 = arith.constant 0 : i32
    %c0_i32_0 = arith.constant 0 : i32
    return %arg0, %c0_i32 : i32, i32
  }
  func.func @transform_1(%arg0: i32) -> (i32, i32) {
    %c0_i32 = arith.constant 0 : i32
    %c0_i32_0 = arith.constant 0 : i32
    %c0_i32_1 = arith.constant 0 : i32
    return %c0_i32, %c0_i32_0 : i32, i32
  }
  func.func @transform_2(%arg0: i32) -> (i32, i32) {
    %c0_i32 = arith.constant 0 : i32
    %c0_i32_0 = arith.constant 0 : i32
    %c0_i32_1 = arith.constant 0 : i32
    return %c0_i32, %c0_i32_0 : i32, i32
  }
  func.func @transform_3(%arg0: i32) -> (i32, i32) {
    %c0_i32 = arith.constant 0 : i32
    %c0_i32_0 = arith.constant 0 : i32
    %c0_i32_1 = arith.constant 0 : i32
    return %c0_i32, %c0_i32_0 : i32, i32
  }
  func.func @transform_4(%arg0: i32) -> (i32, i32) {
    %c0_i32 = arith.constant 0 : i32
    %c0_i32_0 = arith.constant 0 : i32
    %c0_i32_1 = arith.constant 0 : i32
    return %c0_i32, %c0_i32_0 : i32, i32
  }
  func.func @transform_5(%arg0: i32) -> (i32, i32) {
    %c0_i32 = arith.constant 0 : i32
    %c0_i32_0 = arith.constant 0 : i32
    return %arg0, %c0_i32 : i32, i32
  }
}

</mosaic_0001>

<llo_original>
// kernel: perception_fused.1
$region0: #{perception_fused.1}
  #allocation0 [shape = 'u32[]', space=smem, size = 0x4, offset = 0x4, fixed_abs, tag = 'smem constant byte address 0x4 - core index']
  #allocation1 [shape = 'u32[144,128]{1,0:T(1,128)}', space=vmem, size = 0x12000, scoped, tag = 'internal scratch']
  %s0 = inlined_call_operand.vmem [shape: f32[8,32], index: 0, kind: input, shape index: {}]
  %s1 = inlined_call_operand.vmem [shape: f32[32,64], index: 1, kind: input, shape index: {}]
  %s2 = inlined_call_operand.vmem [shape: f32[1,64], index: 2, kind: input, shape index: {}]
  %s3 = inlined_call_operand.vmem [shape: f32[64,16], index: 3, kind: input, shape index: {}]
  %s4 = inlined_call_operand.vmem [shape: f32[1,16], index: 4, kind: input, shape index: {}]
  %s5 = inlined_call_operand.hbm [shape: f32[8,16], index: 5, kind: output, shape index: {}]
  %s6 = sld [smem:[#allocation0]]
  $region30: #{perception_fused.1} parent=0
    _
  %s8 = ssub.s32 1, %s6
  %s9 = scalar_select 0, %s8, %s6
  $region1: #{perception_fused.1} parent=0
    #allocation2 [shape = 'u8[4096]{0}', space=vmem, size = 0x1000, scoped, tag = 'output window, operand 0, single buffered']
    #allocation3 [shape = 's32[1]{0}', space=sflag, size = 0x4, scoped, tag = 'scoped memory for perception_fused.1']
    %10 = vsyncpa [#allocation3], 0
    // Predicated region
    $region2: #{perception_fused.1} parent=1 // pred_check
      _
    $region3: #{perception_fused.1} parent=1 // pred_check_branch
      %12 = sbr.rel (0) target = $region5
    $region4: #{perception_fused.1} parent=1 // pred_region
      _
    $region5: #{perception_fused.1} parent=1 // pred_fallthru
      _
    // Predicated region
    $region6: #{perception_fused.1} parent=1 // pred_check
      _
    $region7: #{perception_fused.1} parent=1 // pred_check_branch
      %14 = sbr.rel (0) target = $region9
    $region8: #{perception_fused.1} parent=1 // pred_region
      _
    $region9: #{perception_fused.1} parent=1 // pred_fallthru
      _
    // Predicated region
    $region10: #{perception_fused.1} parent=1 // pred_check
      _
    $region11: #{perception_fused.1} parent=1 // pred_check_branch
      %16 = sbr.rel (0) target = $region13
    $region12: #{perception_fused.1} parent=1 // pred_region
      _
    $region13: #{perception_fused.1} parent=1 // pred_fallthru
      _
    // Predicated region
    $region14: #{perception_fused.1} parent=1 // pred_check
      _
    $region15: #{perception_fused.1} parent=1 // pred_check_branch
      %18 = sbr.rel (0) target = $region17
    $region16: #{perception_fused.1} parent=1 // pred_region
      _
    $region17: #{perception_fused.1} parent=1 // pred_fallthru
      _
    // Predicated region
    $region18: #{perception_fused.1} parent=1 // pred_check
      _
    $region19: #{perception_fused.1} parent=1 // pred_check_branch
      %20 = sbr.rel (0) target = $region21
    $region20: #{perception_fused.1} parent=1 // pred_region
      _
    $region21: #{perception_fused.1} parent=1 // pred_fallthru
      _
    %v21 = vld [vmem:[%s0] sm:$0xff]
    %v22 = vld [vmem:[%s1] sm:$0xff]
    %v23 = vld [vmem:[%s1 + $0x8] sm:$0xff]
    %v24 = vld [vmem:[%s1 + $0x10] sm:$0xff]
    %v25 = vld [vmem:[%s1 + $0x18] sm:$0xff]
    %v26 = vld [vmem:[%s2] sm:$0x1]
    %v28 = vlaneseq
    %v29 = vshrl.u32 %v28, 7
    %v30 = vsub.s32 0, %v29
    %v31 = vrot.slane %v26, %v30
    %vm33 = vcmask 261120
    %v35 = vsel %vm33, %v21, 0
    %37 = vmatprep.subr.mxu0 0.0
    %38 = vmatpush1.msra.mxu0 0.0
    %39 = vmatprep.subr.mxu0 0.0
    %40 = vmatpush1.msra.mxu0 0.0
    %41 = vmatprep.subr.mxu0 0.0
    %42 = vmatpush1.msra.mxu0 0.0
    %43 = vmatprep.subr.mxu0 0.0
    %44 = vmatpush1.msra.mxu0 0.0
    %45 = vmatprep.subr.mxu0 0.0
    %46 = vmatpush1.msra.mxu0 0.0
    %47 = vmatprep.subr.mxu0 0.0
    %48 = vmatpush1.msra.mxu0 0.0
    %49 = vmatprep.subr.mxu0 0.0
    %50 = vmatpush1.msra.mxu0 0.0
    %51 = vmatprep.subr.mxu0 0.0
    %52 = vmatpush1.msra.mxu0 0.0
    %53 = vmatprep.subr.mxu0 0.0
    %54 = vmatpush1.msra.mxu0 0.0
    %55 = vmatprep.subr.mxu0 0.0
    %56 = vmatpush1.msra.mxu0 0.0
    %57 = vmatprep.subr.mxu0 0.0
    %58 = vmatpush1.msra.mxu0 0.0
    %59 = vmatprep.subr.mxu0 0.0
    %60 = vmatpush1.msra.mxu0 0.0
    %61 = vmatprep.subr.mxu0 0.0
    %62 = vmatpush1.msra.mxu0 %v25
    %63 = vmatprep.subr.mxu0 0.0
    %64 = vmatpush1.msra.mxu0 %v24
    %65 = vmatprep.subr.mxu0 0.0
    %66 = vmatpush1.msra.mxu0 %v23
    %67 = vmatprep.subr.mxu0 0.0
    %68 = vmatpush1.msra.mxu0 %v22
    %69 = vmatprep.subr.mxu0 0.0
    %70 = vmatpush2.msra.mxu0 0.0
    %71 = vmatprep.subr.mxu0 0.0
    %72 = vmatpush2.msra.mxu0 0.0
    %73 = vmatprep.subr.mxu0 0.0
    %74 = vmatpush2.msra.mxu0 0.0
    %75 = vmatprep.subr.mxu0 0.0
    %76 = vmatpush2.msra.mxu0 0.0
    %77 = vmatprep.subr.mxu0 0.0
    %78 = vmatpush2.msra.mxu0 0.0
    %79 = vmatprep.subr.mxu0 0.0
    %80 = vmatpush2.msra.mxu0 0.0
    %81 = vmatprep.subr.mxu0 0.0
    %82 = vmatpush2.msra.mxu0 0.0
    %83 = vmatprep.subr.mxu0 0.0
    %84 = vmatpush2.msra.mxu0 0.0
    %85 = vmatprep.subr.mxu0 0.0
    %86 = vmatpush2.msra.mxu0 0.0
    %87 = vmatprep.subr.mxu0 0.0
    %88 = vmatpush2.msra.mxu0 0.0
    %89 = vmatprep.subr.mxu0 0.0
    %90 = vmatpush2.msra.mxu0 0.0
    %91 = vmatprep.subr.mxu0 0.0
    %92 = vmatpush2.msra.mxu0 0.0
    %93 = vmatprep.subr.mxu0 0.0
    %94 = vmatpush2.msra.mxu0 0.0
    %95 = vmatprep.subr.mxu0 0.0
    %96 = vmatpush2.msra.mxu0 0.0
    %97 = vmatprep.subr.mxu0 0.0
    %98 = vmatpush2.msra.mxu0 0.0
    %99 = vmatprep.subr.mxu0 0.0
    %100 = vmatpush2.msra.mxu0 0.0
    %101 = vmatprep.mubr.f32.mxu0 0.0
    %102 = vmatmul.mubr.f32.gmra.mxu0 %v35
    %v103 = vpop.f32.mrf.mxu0
    %v104 = vadd.f32 %v31, %v103
    %v105 = vpop.f32.mrf.mxu0
    %106 = vdwg.mxu0
    %v107 = vxor.u32 %v104, 2147483648
    %v108 = vmul.f32 %v107, 1.442695
    %v109 = vpow.pop %v108
    %v110 = vadd.f32 %v109, 1.0
    %v111 = vrcp.pop %v110
    %v112 = vmul.f32 1.0, %v111
    %v113 = vld [vmem:[%s3] sm:$0xff]
    %v114 = vld [vmem:[%s3 + $0x8] sm:$0xff]
    %v115 = vld [vmem:[%s3 + $0x10] sm:$0xff]
    %v116 = vld [vmem:[%s3 + $0x18] sm:$0xff]
    %v117 = vld [vmem:[%s3 + $0x20] sm:$0xff]
    %v118 = vld [vmem:[%s3 + $0x28] sm:$0xff]
    %v119 = vld [vmem:[%s3 + $0x30] sm:$0xff]
    %v120 = vld [vmem:[%s3 + $0x38] sm:$0xff]
    %v121 = vld [vmem:[%s4] sm:$0x1]
    %v123 = vlaneseq
    %v124 = vshrl.u32 %v123, 7
    %v125 = vsub.s32 0, %v124
    %v126 = vrot.slane %v121, %v125
    %vm128 = vcmask 523264
    %v130 = vsel %vm128, %v112, 0
    %132 = vmatprep.subr.mxu0 0.0
    %133 = vmatpush1.msra.mxu0 0.0
    %134 = vmatprep.subr.mxu0 0.0
    %135 = vmatpush1.msra.mxu0 0.0
    %136 = vmatprep.subr.mxu0 0.0
    %137 = vmatpush1.msra.mxu0 0.0
    %138 = vmatprep.subr.mxu0 0.0
    %139 = vmatpush1.msra.mxu0 0.0
    %140 = vmatprep.subr.mxu0 0.0
    %141 = vmatpush1.msra.mxu0 0.0
    %142 = vmatprep.subr.mxu0 0.0
    %143 = vmatpush1.msra.mxu0 0.0
    %144 = vmatprep.subr.mxu0 0.0
    %145 = vmatpush1.msra.mxu0 0.0
    %146 = vmatprep.subr.mxu0 0.0
    %147 = vmatpush1.msra.mxu0 0.0
    %148 = vmatprep.subr.mxu0 0.0
    %149 = vmatpush1.msra.mxu0 %v120
    %150 = vmatprep.subr.mxu0 0.0
    %151 = vmatpush1.msra.mxu0 %v119
    %152 = vmatprep.subr.mxu0 0.0
    %153 = vmatpush1.msra.mxu0 %v118
    %154 = vmatprep.subr.mxu0 0.0
    %155 = vmatpush1.msra.mxu0 %v117
    %156 = vmatprep.subr.mxu0 0.0
    %157 = vmatpush1.msra.mxu0 %v116
    %158 = vmatprep.subr.mxu0 0.0
    %159 = vmatpush1.msra.mxu0 %v115
    %160 = vmatprep.subr.mxu0 0.0
    %161 = vmatpush1.msra.mxu0 %v114
    %162 = vmatprep.subr.mxu0 0.0
    %163 = vmatpush1.msra.mxu0 %v113
    %164 = vmatprep.subr.mxu0 0.0
    %165 = vmatpush2.msra.mxu0 0.0
    %166 = vmatprep.subr.mxu0 0.0
    %167 = vmatpush2.msra.mxu0 0.0
    %168 = vmatprep.subr.mxu0 0.0
    %169 = vmatpush2.msra.mxu0 0.0
    %170 = vmatprep.subr.mxu0 0.0
    %171 = vmatpush2.msra.mxu0 0.0
    %172 = vmatprep.subr.mxu0 0.0
    %173 = vmatpush2.msra.mxu0 0.0
    %174 = vmatprep.subr.mxu0 0.0
    %175 = vmatpush2.msra.mxu0 0.0
    %176 = vmatprep.subr.mxu0 0.0
    %177 = vmatpush2.msra.mxu0 0.0
    %178 = vmatprep.subr.mxu0 0.0
    %179 = vmatpush2.msra.mxu0 0.0
    %180 = vmatprep.subr.mxu0 0.0
    %181 = vmatpush2.msra.mxu0 0.0
    %182 = vmatprep.subr.mxu0 0.0
    %183 = vmatpush2.msra.mxu0 0.0
    %184 = vmatprep.subr.mxu0 0.0
    %185 = vmatpush2.msra.mxu0 0.0
    %186 = vmatprep.subr.mxu0 0.0
    %187 = vmatpush2.msra.mxu0 0.0
    %188 = vmatprep.subr.mxu0 0.0
    %189 = vmatpush2.msra.mxu0 0.0
    %190 = vmatprep.subr.mxu0 0.0
    %191 = vmatpush2.msra.mxu0 0.0
    %192 = vmatprep.subr.mxu0 0.0
    %193 = vmatpush2.msra.mxu0 0.0
    %194 = vmatprep.subr.mxu0 0.0
    %195 = vmatpush2.msra.mxu0 0.0
    %196 = vmatprep.mubr.f32.mxu0 0.0
    %197 = vmatmul.mubr.f32.gmra.mxu0 %v130
    %v198 = vpop.f32.mrf.mxu0
    %v199 = vadd.f32 %v126, %v198
    %v200 = vpop.f32.mrf.mxu0
    %201 = vdwg.mxu0
    %v202 = vxor.u32 %v199, 2147483648
    %v203 = vmul.f32 %v202, 1.442695
    %v204 = vpow.pop %v203
    %v205 = vadd.f32 %v204, 1.0
    %v206 = vrcp.pop %v205
    %v207 = vmul.f32 1.0, %v206
    %vm208 = vcmask 130048
    %209 = vst.msk [vmem:[#allocation2] sm:$0xff] %vm208, %v207
    // Predicated region
    $region22: #{perception_fused.1} parent=1 // pred_check
      _
    $region23: #{perception_fused.1} parent=1 // pred_check_branch
      %211 = sbr.rel (0) target = $region25
    $region24: #{perception_fused.1} parent=1 // pred_region
      %s213 = ssub.s32 128, 128
      %214 = vsyncadd [#allocation3], %s213
      %s216 = sshll.u32 [#allocation2], 4
      %s217 = int_to_ptr.vmem [resolvable:$true] %s216
      %219 = dma.vmem_to_hbm [thread:$0]  %s217, 128, %s5, [#allocation3]
    $region25: #{perception_fused.1} parent=1 // pred_fallthru
      _
    // Predicated region
    $region26: #{perception_fused.1} parent=1 // pred_check
      _
    $region27: #{perception_fused.1} parent=1 // pred_check_branch
      %221 = sbr.rel (0) target = $region29
    $region28: #{perception_fused.1} parent=1 // pred_region
      %222 = dma.done [#allocation3], 128
    $region29: #{perception_fused.1} parent=1 // pred_fallthru
      _
    %223 = vsyncpa [#allocation3], 1

</llo_original>
